<compile_context>
chip_gen: v7x
topology: tpu7x:2x2x1
jax: 0.10.0
libtpu: 0.0.40
codegen_flags: <defaults>
</compile_context>

<pallas_src>
import functools

import jax
import jax.numpy as jnp
from jax.experimental import pallas as pl
from jax.experimental.pallas import tpu as pltpu


def _gen_kernels(n_continuous: int, fill: float = 1.0) -> jnp.ndarray:
    """Deterministic weights, identical to Judge._gen_kernels (OIHW).

    Only used by the plain-JAX reference; the Pallas kernel bakes these in.
    """
    n = n_continuous
    c = 2 * n + 2
    k = jnp.zeros((c, 1, n, n), dtype=jnp.float32)
    for i in range(n):
        k = k.at[i, 0, i, :].set(fill)                   # horizontal lines
        k = k.at[n + i, 0, :, i].set(fill)               # vertical lines
    for i in range(n):
        k = k.at[2 * n, 0, i, i].set(fill)               # main diagonal
        k = k.at[2 * n + 1, 0, i, n - 1 - i].set(fill)   # anti-diagonal
    return k


def _judge_kernel(x_ref, out_ref, *, n, h_out, w_out, fill):
    # x_ref  : (H, W) float32, VMEM  (W on the lane axis)
    # out_ref: (2,)  float32, SMEM  -> [max, min]
    x = x_ref[...]
    if fill != 1.0:
        # Weights are fill * {0,1}; scaling the board once is equivalent.
        x = x * jnp.float32(fill)

    # Row-direction windowed sum: s_row[y, x0] = sum_{kj} x[y, x0+kj]
    # shape (H, w_out).  Horizontal channel i output = s_row[i:i+h_out, :].
    s_row = x[:, 0:w_out]
    for kj in range(1, n):
        s_row = s_row + x[:, kj:kj + w_out]

    # Column-direction windowed sum: s_col[y0, x] = sum_{ki} x[y0+ki, x]
    # shape (h_out, W).  Vertical channel n+i output = s_col[:, i:i+w_out].
    s_col = x[0:h_out, :]
    for ki in range(1, n):
        s_col = s_col + x[ki:ki + h_out, :]

    # Diagonal channels: n taps each.
    diag = x[0:h_out, 0:w_out]
    anti = x[0:h_out, (n - 1):(n - 1) + w_out]
    for k in range(1, n):
        diag = diag + x[k:k + h_out, k:k + w_out]
        anti = anti + x[k:k + h_out, (n - 1 - k):(n - 1 - k) + w_out]

    # All per-channel conv maps, each (h_out, w_out).  Static slices are free.
    ch_maps = (
        [s_row[i:i + h_out, :] for i in range(n)]     # channels 0..n-1
        + [s_col[:, i:i + w_out] for i in range(n)]   # channels n..2n-1
        + [diag, anti]                                # channels 2n, 2n+1
    )

    # Two-stage reduction: element-wise max/min across channels (VALU),
    # then a single cross-lane max and min (XLU).
    g_max = ch_maps[0]
    g_min = ch_maps[0]
    for m in ch_maps[1:]:
        g_max = jnp.maximum(g_max, m)
        g_min = jnp.minimum(g_min, m)

    out_ref[0] = jnp.max(g_max)
    out_ref[1] = jnp.min(g_min)


@functools.partial(jax.jit, static_argnums=(1,))
def judge_forward(game_state: jnp.ndarray, n_continuous: int) -> jnp.ndarray:
    """Pallas equivalent of Judge.forward.

    Returns a (2,) float32 array [conv_max, conv_min]; the caller may .item()
    it (that is the PyTorch host round-trip, deliberately left outside).
    """
    h, w = game_state.shape
    n = n_continuous
    h_out, w_out = h - n + 1, w - n + 1
    assert h_out >= 1 and w_out >= 1, "board must be at least kernel-sized"

    x = jnp.asarray(game_state, dtype=jnp.float32)

    kern = functools.partial(
        _judge_kernel, n=n, h_out=h_out, w_out=w_out, fill=1.0
    )
    out = pl.pallas_call(
        kern,
        out_shape=jax.ShapeDtypeStruct((2,), jnp.float32),
        in_specs=[
            pl.BlockSpec(memory_space=pltpu.MemorySpace.VMEM),  # board
        ],
        out_specs=pl.BlockSpec(memory_space=pltpu.MemorySpace.SMEM),
    )(x)
    return out


def _reference_forward(game_state: jnp.ndarray, n_continuous: int):
    """Plain-JAX reference (lax conv, NCHW) for a correctness check."""
    x = jnp.asarray(game_state, dtype=jnp.float32)
    h, w = x.shape
    y = jax.lax.conv_general_dilated(
        x.reshape(1, 1, h, w),
        _gen_kernels(n_continuous),
        window_strides=(1, 1),
        padding="VALID",
        dimension_numbers=("NCHW", "OIHW", "NCHW"),
    )
    return float(jnp.max(y)), float(jnp.min(y))


if __name__ == "__main__":
    n_continuous = 4          # -> 10 output channels, 4x4 kernels
    H, W = 16, 16             # small board

    key = jax.random.PRNGKey(0)
    game_state = jax.random.uniform(
        key, (H, W), dtype=jnp.float32, minval=-1.0, maxval=1.0
    )

    out = judge_forward(game_state, n_continuous)
    out = jax.block_until_ready(out)

    ref = _reference_forward(game_state, n_continuous)
    assert abs(float(out[0]) - ref[0]) < 1e-4, (out, ref)
    assert abs(float(out[1]) - ref[1]) < 1e-4, (out, ref)

    print("KERNEL_OK")
</pallas_src>

<mosaic_0001>
module attributes {stable_mosaic.version = 11 : i64} {
  func.func @_judge_kernel(%arg0: memref<16x16xf32, #tpu.memory_space<vmem>>, %arg1: memref<2xf32, #tpu.memory_space<smem>>) attributes {dimension_semantics = [], scalar_prefetch = 0 : i64, scratch_operands = 0 : i64, tpu.core_type = #tpu.core_type<tc>} {
    %c0 = arith.constant 0 : index
    %c0_0 = arith.constant 0 : index
    %0 = vector.load %arg0[%c0, %c0_0] : memref<16x16xf32, #tpu.memory_space<vmem>>, vector<16x16xf32>
    %1 = vector.extract_strided_slice %0 {offsets = [0, 0], sizes = [16, 13], strides = [1, 1]} : vector<16x16xf32> to vector<16x13xf32>
    %2 = vector.extract_strided_slice %0 {offsets = [0, 1], sizes = [16, 13], strides = [1, 1]} : vector<16x16xf32> to vector<16x13xf32>
    %3 = arith.addf %1, %2 : vector<16x13xf32>
    %4 = vector.extract_strided_slice %0 {offsets = [0, 2], sizes = [16, 13], strides = [1, 1]} : vector<16x16xf32> to vector<16x13xf32>
    %5 = arith.addf %3, %4 : vector<16x13xf32>
    %6 = vector.extract_strided_slice %0 {offsets = [0, 3], sizes = [16, 13], strides = [1, 1]} : vector<16x16xf32> to vector<16x13xf32>
    %7 = arith.addf %5, %6 : vector<16x13xf32>
    %8 = vector.extract_strided_slice %0 {offsets = [0, 0], sizes = [13, 16], strides = [1, 1]} : vector<16x16xf32> to vector<13x16xf32>
    %9 = vector.extract_strided_slice %0 {offsets = [1, 0], sizes = [13, 16], strides = [1, 1]} : vector<16x16xf32> to vector<13x16xf32>
    %10 = arith.addf %8, %9 : vector<13x16xf32>
    %11 = vector.extract_strided_slice %0 {offsets = [2, 0], sizes = [13, 16], strides = [1, 1]} : vector<16x16xf32> to vector<13x16xf32>
    %12 = arith.addf %10, %11 : vector<13x16xf32>
    %13 = vector.extract_strided_slice %0 {offsets = [3, 0], sizes = [13, 16], strides = [1, 1]} : vector<16x16xf32> to vector<13x16xf32>
    %14 = arith.addf %12, %13 : vector<13x16xf32>
    %15 = vector.extract_strided_slice %0 {offsets = [0, 0], sizes = [13, 13], strides = [1, 1]} : vector<16x16xf32> to vector<13x13xf32>
    %16 = vector.extract_strided_slice %0 {offsets = [0, 3], sizes = [13, 13], strides = [1, 1]} : vector<16x16xf32> to vector<13x13xf32>
    %17 = vector.extract_strided_slice %0 {offsets = [1, 1], sizes = [13, 13], strides = [1, 1]} : vector<16x16xf32> to vector<13x13xf32>
    %18 = arith.addf %15, %17 : vector<13x13xf32>
    %19 = vector.extract_strided_slice %0 {offsets = [1, 2], sizes = [13, 13], strides = [1, 1]} : vector<16x16xf32> to vector<13x13xf32>
    %20 = arith.addf %16, %19 : vector<13x13xf32>
    %21 = vector.extract_strided_slice %0 {offsets = [2, 2], sizes = [13, 13], strides = [1, 1]} : vector<16x16xf32> to vector<13x13xf32>
    %22 = arith.addf %18, %21 : vector<13x13xf32>
    %23 = vector.extract_strided_slice %0 {offsets = [2, 1], sizes = [13, 13], strides = [1, 1]} : vector<16x16xf32> to vector<13x13xf32>
    %24 = arith.addf %20, %23 : vector<13x13xf32>
    %25 = vector.extract_strided_slice %0 {offsets = [3, 3], sizes = [13, 13], strides = [1, 1]} : vector<16x16xf32> to vector<13x13xf32>
    %26 = arith.addf %22, %25 : vector<13x13xf32>
    %27 = vector.extract_strided_slice %0 {offsets = [3, 0], sizes = [13, 13], strides = [1, 1]} : vector<16x16xf32> to vector<13x13xf32>
    %28 = arith.addf %24, %27 : vector<13x13xf32>
    %29 = vector.extract_strided_slice %7 {offsets = [0, 0], sizes = [13, 13], strides = [1, 1]} : vector<16x13xf32> to vector<13x13xf32>
    %30 = vector.extract_strided_slice %7 {offsets = [1, 0], sizes = [13, 13], strides = [1, 1]} : vector<16x13xf32> to vector<13x13xf32>
    %31 = vector.extract_strided_slice %7 {offsets = [2, 0], sizes = [13, 13], strides = [1, 1]} : vector<16x13xf32> to vector<13x13xf32>
    %32 = vector.extract_strided_slice %7 {offsets = [3, 0], sizes = [13, 13], strides = [1, 1]} : vector<16x13xf32> to vector<13x13xf32>
    %33 = vector.extract_strided_slice %14 {offsets = [0, 0], sizes = [13, 13], strides = [1, 1]} : vector<13x16xf32> to vector<13x13xf32>
    %34 = vector.extract_strided_slice %14 {offsets = [0, 1], sizes = [13, 13], strides = [1, 1]} : vector<13x16xf32> to vector<13x13xf32>
    %35 = vector.extract_strided_slice %14 {offsets = [0, 2], sizes = [13, 13], strides = [1, 1]} : vector<13x16xf32> to vector<13x13xf32>
    %36 = vector.extract_strided_slice %14 {offsets = [0, 3], sizes = [13, 13], strides = [1, 1]} : vector<13x16xf32> to vector<13x13xf32>
    %37 = arith.maximumf %29, %30 : vector<13x13xf32>
    %38 = arith.minimumf %29, %30 : vector<13x13xf32>
    %39 = arith.maximumf %37, %31 : vector<13x13xf32>
    %40 = arith.minimumf %38, %31 : vector<13x13xf32>
    %41 = arith.maximumf %39, %32 : vector<13x13xf32>
    %42 = arith.minimumf %40, %32 : vector<13x13xf32>
    %43 = arith.maximumf %41, %33 : vector<13x13xf32>
    %44 = arith.minimumf %42, %33 : vector<13x13xf32>
    %45 = arith.maximumf %43, %34 : vector<13x13xf32>
    %46 = arith.minimumf %44, %34 : vector<13x13xf32>
    %47 = arith.maximumf %45, %35 : vector<13x13xf32>
    %48 = arith.minimumf %46, %35 : vector<13x13xf32>
    %49 = arith.maximumf %47, %36 : vector<13x13xf32>
    %50 = arith.minimumf %48, %36 : vector<13x13xf32>
    %51 = arith.maximumf %49, %26 : vector<13x13xf32>
    %52 = arith.minimumf %50, %26 : vector<13x13xf32>
    %53 = arith.maximumf %51, %28 : vector<13x13xf32>
    %54 = arith.minimumf %52, %28 : vector<13x13xf32>
    %55 = vector.shape_cast %53 : vector<13x13xf32> to vector<1x13x13xf32>
    %cst = arith.constant dense<0xFF800000> : vector<1xf32>
    %56 = vector.multi_reduction <maximumf>, %55, %cst [1, 2] : vector<1x13x13xf32> to vector<1xf32>
    %57 = vector.shape_cast %56 : vector<1xf32> to vector<1x1x1xf32>
    %58 = vector.extract %57[0, 0, 0] : f32 from vector<1x1x1xf32>
    %c0_1 = arith.constant 0 : index
    %59 = memref.load %arg1[%c0_1] : memref<2xf32, #tpu.memory_space<smem>>
    memref.store %58, %arg1[%c0_1] : memref<2xf32, #tpu.memory_space<smem>>
    %60 = vector.shape_cast %54 : vector<13x13xf32> to vector<1x13x13xf32>
    %cst_2 = arith.constant dense<0x7F800000> : vector<1xf32>
    %61 = vector.multi_reduction <minimumf>, %60, %cst_2 [1, 2] : vector<1x13x13xf32> to vector<1xf32>
    %62 = vector.shape_cast %61 : vector<1xf32> to vector<1x1x1xf32>
    %63 = vector.extract %62[0, 0, 0] : f32 from vector<1x1x1xf32>
    %c1 = arith.constant 1 : index
    %64 = memref.load %arg1[%c1] : memref<2xf32, #tpu.memory_space<smem>>
    memref.store %63, %arg1[%c1] : memref<2xf32, #tpu.memory_space<smem>>
    return
  }
}

</mosaic_0001>

<llo_original>
// kernel: judge_forward.1
$region0: #{judge_forward.1}
  #allocation0 [shape = 'u32[]', space=smem, size = 0x4, offset = 0x4, fixed_abs, tag = 'smem constant byte address 0x4 - core index']
  #allocation1 [shape = 'u32[144,128]{1,0:T(1,128)}', space=vmem, size = 0x12000, scoped, tag = 'internal scratch']
  %s0 = inlined_call_operand.hbm [shape: f32[16,16], index: 0, kind: input, shape index: {}]
  %s1 = inlined_call_operand.hbm [shape: f32[2], index: 1, kind: output, shape index: {}]
  %s2 = sld [smem:[#allocation0]]
  $region18: #{judge_forward.1} parent=0
    _
  %s4 = ssub.s32 1, %s2
  %s5 = scalar_select 0, %s4, %s2
  $region1: #{judge_forward.1} parent=0
    #allocation2 [shape = 'u8[8192]{0}', space=vmem, size = 0x2000, scoped, tag = 'input window, operand 0, single buffered']
    #allocation3 [shape = 's32[1]{0}', space=sflag, size = 0x4, scoped, tag = 'scoped memory for judge_forward.1']
    #allocation4 [shape = 's32[1]{0}', space=sflag, size = 0x4, scoped, tag = 'scoped memory for judge_forward.1']
    #allocation5 [shape = 'u8[512]{0}', space=smem, size = 0x200, scoped, tag = 'output window, operand 0, single buffered']
    %6 = vsyncpa [#allocation3], 0
    %7 = vsyncpa [#allocation4], 0
    // Predicated region
    $region2: #{judge_forward.1} parent=1 // pred_check
      _
    $region3: #{judge_forward.1} parent=1 // pred_check_branch
      %9 = sbr.rel (0) target = $region5
    $region4: #{judge_forward.1} parent=1 // pred_region
      %s11 = ssub.s32 256, 256
      %12 = vsyncadd [#allocation3], %s11
      %s13 = sshll.u32 [#allocation2], 4
      %s14 = int_to_ptr.vmem [resolvable:$true] %s13
      %19 = dma.hbm_to_vmem [thread:$0]  %s0, 256, %s14, [#allocation3], 128, 128, 8
    $region5: #{judge_forward.1} parent=1 // pred_fallthru
      _
    // Predicated region
    $region6: #{judge_forward.1} parent=1 // pred_check
      _
    $region7: #{judge_forward.1} parent=1 // pred_check_branch
      %21 = sbr.rel (0) target = $region9
    $region8: #{judge_forward.1} parent=1 // pred_region
      %22 = dma.done [#allocation3], 256
    $region9: #{judge_forward.1} parent=1 // pred_fallthru
      _
    %v23 = vld [vmem:[#allocation2] sm:$0xff]
    %v24 = vld [vmem:[#allocation2 + $0x8] sm:$0xff]
    %27 = vrot.lane.b32.xlu0 %v23, 127
    %v28 = vpop.permute.xlu0 %27
    %29 = vrot.lane.b32.xlu0 %v24, 127
    %v30 = vpop.permute.xlu0 %29
    %v33 = vadd.f32 %v23, %v28
    %v34 = vadd.f32 %v24, %v30
    %35 = vrot.lane.b32.xlu0 %v23, 126
    %v36 = vpop.permute.xlu0 %35
    %37 = vrot.lane.b32.xlu0 %v24, 126
    %v38 = vpop.permute.xlu0 %37
    %v41 = vadd.f32 %v33, %v36
    %v42 = vadd.f32 %v34, %v38
    %43 = vrot.lane.b32.xlu0 %v23, 125
    %v44 = vpop.permute.xlu0 %43
    %45 = vrot.lane.b32.xlu0 %v24, 125
    %v46 = vpop.permute.xlu0 %45
    %v49 = vadd.f32 %v41, %v44
    %v50 = vadd.f32 %v42, %v46
    %vm51 = vcmask 1046528
    %v52 = vrot.slane %v23, 1
    %v53 = vrot.slane %v24, 1
    %v54 = vsel %vm51, %v52, %v53
    %v57 = vadd.f32 %v23, %v54
    %v58 = vadd.f32 %v24, %v53
    %vm59 = vcmask 1045504
    %v60 = vrot.slane %v23, 2
    %v61 = vrot.slane %v24, 2
    %v62 = vsel %vm59, %v60, %v61
    %v65 = vadd.f32 %v57, %v62
    %v66 = vadd.f32 %v58, %v61
    %vm67 = vcmask 1044480
    %v68 = vrot.slane %v23, 3
    %v69 = vrot.slane %v24, 3
    %v70 = vsel %vm67, %v68, %v69
    %v73 = vadd.f32 %v65, %v70
    %v74 = vadd.f32 %v66, %v69
    %75 = vrot.lane.b32.xlu0 %v54, 127
    %v76 = vpop.permute.xlu0 %75
    %77 = vrot.lane.b32.xlu0 %v53, 127
    %v78 = vpop.permute.xlu0 %77
    %v81 = vadd.f32 %v23, %v76
    %v82 = vadd.f32 %v24, %v78
    %83 = vrot.lane.b32.xlu0 %v54, 1
    %v84 = vpop.permute.xlu0 %83
    %85 = vrot.lane.b32.xlu0 %v53, 1
    %v86 = vpop.permute.xlu0 %85
    %v89 = vadd.f32 %v23, %v84
    %v90 = vadd.f32 %v24, %v86
    %91 = vrot.lane.b32.xlu0 %v62, 126
    %v92 = vpop.permute.xlu0 %91
    %93 = vrot.lane.b32.xlu0 %v61, 126
    %v94 = vpop.permute.xlu0 %93
    %v97 = vadd.f32 %v81, %v92
    %v98 = vadd.f32 %v82, %v94
    %99 = vrot.lane.b32.xlu0 %v62, 2
    %v100 = vpop.permute.xlu0 %99
    %101 = vrot.lane.b32.xlu0 %v61, 2
    %v102 = vpop.permute.xlu0 %101
    %v105 = vadd.f32 %v89, %v100
    %v106 = vadd.f32 %v90, %v102
    %107 = vrot.lane.b32.xlu0 %v70, 125
    %v108 = vpop.permute.xlu0 %107
    %109 = vrot.lane.b32.xlu0 %v69, 125
    %v110 = vpop.permute.xlu0 %109
    %v113 = vadd.f32 %v97, %v108
    %v114 = vadd.f32 %v98, %v110
    %115 = vrot.lane.b32.xlu0 %v70, 3
    %v116 = vpop.permute.xlu0 %115
    %117 = vrot.lane.b32.xlu0 %v69, 3
    %v118 = vpop.permute.xlu0 %117
    %v121 = vadd.f32 %v105, %v116
    %v122 = vadd.f32 %v106, %v118
    %v125 = vrot.slane %v49, 1
    %v126 = vrot.slane %v50, 1
    %v127 = vsel %vm51, %v125, %v126
    %v130 = vmax.f32 %v49, %v127
    %v131 = vmax.f32 %v50, %v126
    %v132 = vmin.f32 %v49, %v127
    %v133 = vmin.f32 %v50, %v126
    %v134 = vrot.slane %v49, 2
    %v135 = vrot.slane %v50, 2
    %v136 = vsel %vm59, %v134, %v135
    %v139 = vmax.f32 %v130, %v136
    %v140 = vmax.f32 %v131, %v135
    %v141 = vmin.f32 %v132, %v136
    %v142 = vmin.f32 %v133, %v135
    %v143 = vrot.slane %v49, 3
    %v144 = vrot.slane %v50, 3
    %v145 = vsel %vm67, %v143, %v144
    %v148 = vmax.f32 %v139, %v145
    %v149 = vmax.f32 %v140, %v144
    %v150 = vmin.f32 %v141, %v145
    %v151 = vmin.f32 %v142, %v144
    %v152 = vmax.f32 %v148, %v73
    %v153 = vmax.f32 %v149, %v74
    %v154 = vmin.f32 %v150, %v73
    %v155 = vmin.f32 %v151, %v74
    %158 = vrot.lane.b32.xlu0 %v73, 127
    %v159 = vpop.permute.xlu0 %158
    %160 = vrot.lane.b32.xlu0 %v74, 127
    %v161 = vpop.permute.xlu0 %160
    %v164 = vmax.f32 %v152, %v159
    %v165 = vmax.f32 %v153, %v161
    %v166 = vmin.f32 %v154, %v159
    %v167 = vmin.f32 %v155, %v161
    %168 = vrot.lane.b32.xlu0 %v73, 126
    %v169 = vpop.permute.xlu0 %168
    %170 = vrot.lane.b32.xlu0 %v74, 126
    %v171 = vpop.permute.xlu0 %170
    %v174 = vmax.f32 %v164, %v169
    %v175 = vmax.f32 %v165, %v171
    %v176 = vmin.f32 %v166, %v169
    %v177 = vmin.f32 %v167, %v171
    %178 = vrot.lane.b32.xlu0 %v73, 125
    %v179 = vpop.permute.xlu0 %178
    %180 = vrot.lane.b32.xlu0 %v74, 125
    %v181 = vpop.permute.xlu0 %180
    %v184 = vmax.f32 %v174, %v179
    %v185 = vmax.f32 %v175, %v181
    %v186 = vmin.f32 %v176, %v179
    %v187 = vmin.f32 %v177, %v181
    %v188 = vmax.f32 %v184, %v113
    %v189 = vmax.f32 %v185, %v114
    %v190 = vmin.f32 %v186, %v113
    %v191 = vmin.f32 %v187, %v114
    %194 = vrot.lane.b32.xlu0 %v121, 125
    %v195 = vpop.permute.xlu0 %194
    %196 = vrot.lane.b32.xlu0 %v122, 125
    %v197 = vpop.permute.xlu0 %196
    %v200 = vmax.f32 %v188, %v195
    %v201 = vmax.f32 %v189, %v197
    %v202 = vmin.f32 %v190, %v195
    %v203 = vmin.f32 %v191, %v197
    %vm204 = vcmask 105472
    %v205 = vsel %vm204, %v200, -inf
    %vm206 = vcmask 102400
    %v207 = vsel %vm206, %v201, -inf
    %v208 = vmax.f32 %v205, %v207
    %209 = vmax.xlane.f32.xlu0 %v208
    %v210 = vpop.xlane.xlu0 %209
    %v211 = vrot.slane %v210, 4
    %v212 = vmax.f32 %v210, %v211
    %v213 = vrot.slane %v212, 2
    %v214 = vmax.f32 %v212, %v213
    %v215 = vrot.slane %v214, 1
    %v216 = vmax.f32 %v214, %v215
    %s217 = vtos %v216
    %s218 = scalar_lea.smem [#allocation5], 0
    %219 = sst [smem:[%s218]] %s217
    %v220 = vsel %vm204, %v202, inf
    %v221 = vsel %vm206, %v203, inf
    %v222 = vmin.f32 %v220, %v221
    %223 = vmin.xlane.f32.xlu0 %v222
    %v224 = vpop.xlane.xlu0 %223
    %v225 = vrot.slane %v224, 4
    %v226 = vmin.f32 %v224, %v225
    %v227 = vrot.slane %v226, 2
    %v228 = vmin.f32 %v226, %v227
    %v229 = vrot.slane %v228, 1
    %v230 = vmin.f32 %v228, %v229
    %s231 = vtos %v230
    %s232 = scalar_lea.smem [#allocation5], 1
    %233 = sst [smem:[%s232]] %s231
    // Predicated region
    $region10: #{judge_forward.1} parent=1 // pred_check
      _
    $region11: #{judge_forward.1} parent=1 // pred_check_branch
      %235 = sbr.rel (0) target = $region13
    $region12: #{judge_forward.1} parent=1 // pred_region
      %s237 = ssub.s32 16, 16
      %238 = vsyncadd [#allocation4], %s237
      %241 = dma.smem_to_hbm [#allocation5], 16, %s1, [#allocation4]
    $region13: #{judge_forward.1} parent=1 // pred_fallthru
      _
    // Predicated region
    $region14: #{judge_forward.1} parent=1 // pred_check
      _
    $region15: #{judge_forward.1} parent=1 // pred_check_branch
      %243 = sbr.rel (0) target = $region17
    $region16: #{judge_forward.1} parent=1 // pred_region
      %244 = dma.done [#allocation4], 16
    $region17: #{judge_forward.1} parent=1 // pred_fallthru
      _
    %245 = sfence
    %246 = vsyncpa [#allocation3], 1
    %247 = vsyncpa [#allocation4], 1

</llo_original>
